<compile_context>
chip_gen: v7x
topology: tpu7x:2x2x1
jax: 0.10.0
libtpu: 0.0.40
codegen_flags: <defaults>
</compile_context>

<pallas_src>
import functools

import jax
import jax.numpy as jnp
import numpy as np
from jax import lax
from jax.experimental import pallas as pl
from jax.experimental.pallas import tpu as pltpu

NEG_SLOPE = 0.01  # PyTorch LeakyReLU default


def _cdiv(a, b):
    return -(-a // b)


def _vmem_capacity_bytes():
    """Physical VMEM of the local chip; conservative (v7x) fallback."""
    try:
        return int(pltpu.get_tpu_info().vmem_capacity_bytes)
    except Exception:
        return 64 * 1024 * 1024


def _pick_tile_h(N, H, W, Cin, Cout, budget_bytes):
    """Rows of input per grid step.  Budget counts double-buffered in/out
    pipeline blocks, the four shifted piece values and the f32 accumulator,
    plus resident (lane-padded) weights/bias."""
    R = W + 1
    per_row = 4 * R * (2 * Cin          # input block  x2 (pipeline buffers)
                       + 2 * 4 * Cout   # output block x2
                       + 4 * Cin        # four shifted tap windows (live values)
                       + 2 * 4 * Cout)  # f32 accumulator + epilogue temp
    fixed = 4 * 2 * (4 * 4 * Cout * 128 + 4 * Cout * 128) + (2 << 20)
    th = max(1, min(H, (budget_bytes - fixed) // per_row))
    n_h = _cdiv(H, th)
    th = _cdiv(H, n_h)                  # rebalance tile sizes
    n_h = _cdiv(H, th)
    if N == 1 and n_h == 1 and H >= 2:
        # Batch alone cannot feed both v7x TensorCores -> split H once.
        n_h, th = 2, _cdiv(H, 2)
    return th, n_h


def _build_w_pieces(weight, bias):
    """Per-tap-piece block weights for the stride-2 parity decomposition.

    Pieces (matmul rhs):   0: x[i,j]   1: x[i,j+1]   2: x[i+1,j]   3: x[i+1,j+1]
    Output rows (matmul lhs M): parity-major, row = (2*pi + pj) * Cout + cout,
    so the kernel output is four parity planes stacked along channels.
    """
    Cin, Cout = weight.shape[0], weight.shape[1]
    w = weight.astype(jnp.float32)                       # (Cin, Cout, 3, 3)
    wp = jnp.zeros((4, 4 * Cout, Cin), jnp.float32)
    # (piece, parity, kh, kw): out[2i+pi, 2j+pj] += W[kh,kw]^T x_piece.
    taps = [(0, 0, 1, 1), (0, 1, 1, 2), (0, 2, 2, 1), (0, 3, 2, 2),
            (1, 1, 1, 0), (1, 3, 2, 0),
            (2, 2, 0, 1), (2, 3, 0, 2),
            (3, 3, 0, 0)]
    for piece, parity, kh, kw in taps:
        blk = jnp.transpose(w[:, :, kh, kw])             # (Cout, Cin)
        wp = wp.at[piece, parity * Cout:(parity + 1) * Cout, :].set(blk)
    b = jnp.tile(bias.astype(jnp.float32), 4).reshape(4 * Cout, 1)
    return wp, b


def _upsampling_kernel(x_ref, w_ref, b_ref, o_ref, *, row_stride):
    # x_ref: (1, 1, Cin, L)       one H-tile of the zero-padded NCHW input,
    #                             rows flattened with row stride R = W+1,
    #                             L = (TH+2)*R  (one halo row + one slack row).
    # w_ref: (4, 4*Cout, Cin)     per-piece block weights (resident).
    # b_ref: (4*Cout, 1)          bias per (parity, cout) output row (resident).
    # o_ref: (1, 1, 4*Cout, S)    parity-major output, S = TH*R flat spatial.
    S = o_ref.shape[3]
    R = row_stride
    dn = (((1,), (0,)), ((), ()))

    # All four transposed-conv taps are shifted windows of the same flat buffer
    # (padded column/rows supply the zeros) -- no concats, no reshapes.
    x00 = x_ref[0, 0, :, pl.ds(0, S)]        # x[i,   j  ]
    x01 = x_ref[0, 0, :, pl.ds(1, S)]        # x[i,   j+1]
    x10 = x_ref[0, 0, :, pl.ds(R, S)]        # x[i+1, j  ]
    x11 = x_ref[0, 0, :, pl.ds(R + 1, S)]    # x[i+1, j+1]

    # Four accumulated MXU matmuls: (4*Cout, Cin) @ (Cin, S), f32 accumulate.
    y = lax.dot_general(w_ref[0], x00, dn, preferred_element_type=jnp.float32)
    y = y + lax.dot_general(w_ref[1], x01, dn, preferred_element_type=jnp.float32)
    y = y + lax.dot_general(w_ref[2], x10, dn, preferred_element_type=jnp.float32)
    y = y + lax.dot_general(w_ref[3], x11, dn, preferred_element_type=jnp.float32)

    y = y + b_ref[...]                       # bias, broadcast over flat spatial
    y = jnp.where(y > 0, y, NEG_SLOPE * y)   # LeakyReLU
    o_ref[0, 0] = y.astype(o_ref.dtype)


def upsampling_forward(x_nchw, weight, bias):
    """x_nchw: (N, Cin, H, W); weight: (Cin, Cout, 3, 3); bias: (Cout,).
    Returns (N, Cout, 2H, 2W) = LeakyReLU(ConvTranspose2d(k=3, s=2, p=1, op=1))."""
    N, Cin, H, W = x_nchw.shape
    Cout = weight.shape[1]
    R = W + 1

    cap = _vmem_capacity_bytes()
    TH, n_h = _pick_tile_h(N, H, W, Cin, Cout, budget_bytes=int(cap * 0.4))
    Hp = TH * n_h                     # padded row count (no divisor requirement)
    L = (TH + 2) * R
    S = TH * R

    x = x_nchw.astype(jnp.float32)
    # Zero pad: +1 column so the j+1 taps read zeros at the right edge; extra
    # rows give every tile its i+1 halo row and make H split evenly into tiles.
    x_pad = jnp.pad(x, ((0, 0), (0, 0), (0, Hp - H + 2), (0, 1)))
    if n_h == 1:
        x_tiles = x_pad.reshape(N, 1, Cin, L)
    else:
        # Explicit (overlapping) halo-inclusive tiles built once, input-sized.
        slabs = [x_pad[:, :, h * TH:h * TH + TH + 2, :] for h in range(n_h)]
        x_tiles = jnp.stack(slabs, axis=1).reshape(N, n_h, Cin, L)

    w_pieces, b_col = _build_w_pieces(weight, bias)

    kernel = functools.partial(_upsampling_kernel, row_stride=R)
    out_k = pl.pallas_call(
        kernel,
        out_shape=jax.ShapeDtypeStruct((N, n_h, 4 * Cout, S), jnp.float32),
        grid=(N, n_h),
        in_specs=[
            pl.BlockSpec((1, 1, Cin, L), lambda n, h: (n, h, 0, 0)),
            pl.BlockSpec((4, 4 * Cout, Cin), lambda n, h: (0, 0, 0)),
            pl.BlockSpec((4 * Cout, 1), lambda n, h: (0, 0)),
        ],
        out_specs=pl.BlockSpec((1, 1, 4 * Cout, S), lambda n, h: (n, h, 0, 0)),
        compiler_params=pltpu.CompilerParams(
            dimension_semantics=("parallel", "parallel"),
            vmem_limit_bytes=int(cap * 0.6)),
    )(x_tiles, w_pieces, b_col)

    # De-interleave the four parity planes into NCHW.  This single XLA pass
    # touches exactly output-sized data (no 4x channel padding any more); the
    # phantom column (j = W) and phantom rows (i >= H) are dropped here.
    y = out_k.reshape(N, n_h, 2, 2, Cout, TH, R)
    y = jnp.transpose(y, (0, 4, 1, 5, 2, 6, 3))        # (N,Cout,n_h,TH,pi,R,pj)
    y = y.reshape(N, Cout, Hp, 2, R, 2)[:, :, :H, :, :W, :]
    return y.reshape(N, Cout, 2 * H, 2 * W)


def _reference(x_nchw, weight, bias):
    """Pure-JAX reference: transposed conv as lhs-dilated conv with flipped kernel."""
    Cout = weight.shape[1]
    k = jnp.transpose(weight, (1, 0, 2, 3))[:, :, ::-1, ::-1]     # OIHW, flipped
    y = jax.lax.conv_general_dilated(
        x_nchw, k, window_strides=(1, 1), padding=((1, 2), (1, 2)),
        lhs_dilation=(2, 2), dimension_numbers=("NCHW", "OIHW", "NCHW"))
    y = y + bias.reshape(1, Cout, 1, 1)
    return jnp.where(y > 0, y, NEG_SLOPE * y)


if __name__ == "__main__":
    N, Cin, Cout, H, W = 2, 4, 8, 16, 16

    key = jax.random.PRNGKey(0)
    kx, kw, kb = jax.random.split(key, 3)
    x = jax.random.normal(kx, (N, Cin, H, W), dtype=jnp.float32)
    # ConvTranspose2d weight shape: (in_channels, out_channels, kH, kW)
    fan = Cin * 3 * 3
    weight = jax.random.uniform(kw, (Cin, Cout, 3, 3), jnp.float32,
                                minval=-1.0, maxval=1.0) / np.sqrt(fan)
    bias = jax.random.uniform(kb, (Cout,), jnp.float32,
                              minval=-1.0, maxval=1.0) / np.sqrt(fan)

    fwd = jax.jit(upsampling_forward)
    out = jax.block_until_ready(fwd(x, weight, bias))
    assert out.shape == (N, Cout, 2 * H, 2 * W), out.shape

    ref = jax.block_until_ready(_reference(x, weight, bias))
    np.testing.assert_allclose(np.asarray(out), np.asarray(ref),
                               rtol=2e-5, atol=2e-5)

    print("KERNEL_OK")
</pallas_src>

<mosaic_0001>
module attributes {stable_mosaic.version = 11 : i64} {
  func.func @_upsampling_kernel(%arg0: i32, %arg1: i32, %arg2: memref<1x1x4x306xf32, #tpu.memory_space<vmem>>, %arg3: memref<4x32x4xf32, #tpu.memory_space<vmem>>, %arg4: memref<32x1xf32, #tpu.memory_space<vmem>>, %arg5: memref<1x1x32x272xf32, #tpu.memory_space<vmem>>) attributes {dimension_semantics = [#tpu.dimension_semantics<parallel>, #tpu.dimension_semantics<parallel>], iteration_bounds = array<i64: 2, 1>, scalar_prefetch = 0 : i64, scratch_operands = 0 : i64, tpu.core_type = #tpu.core_type<tc>, window_params = [{transform_indices = @transform_0, window_bounds = array<i64: 1, 1, 4, 306>}, {pipeline_mode = #tpu.pipeline_mode<synchronous>, transform_indices = @transform_1, window_bounds = array<i64: 4, 32, 4>}, {pipeline_mode = #tpu.pipeline_mode<synchronous>, transform_indices = @transform_2, window_bounds = array<i64: 32, 1>}, {transform_indices = @transform_3, window_bounds = array<i64: 1, 1, 32, 272>}]} {
    %c0 = arith.constant 0 : index
    %c0_0 = arith.constant 0 : index
    %c0_1 = arith.constant 0 : index
    %c0_2 = arith.constant 0 : index
    %0 = vector.load %arg2[%c0, %c0_0, %c0_1, %c0_2] : memref<1x1x4x306xf32, #tpu.memory_space<vmem>>, vector<1x1x4x272xf32>
    %1 = vector.shape_cast %0 : vector<1x1x4x272xf32> to vector<4x272xf32>
    %c0_3 = arith.constant 0 : index
    %c0_4 = arith.constant 0 : index
    %c0_5 = arith.constant 0 : index
    %c1 = arith.constant 1 : index
    %2 = vector.load %arg2[%c0_3, %c0_4, %c0_5, %c1] : memref<1x1x4x306xf32, #tpu.memory_space<vmem>>, vector<1x1x4x272xf32>
    %3 = vector.shape_cast %2 : vector<1x1x4x272xf32> to vector<4x272xf32>
    %c0_6 = arith.constant 0 : index
    %c0_7 = arith.constant 0 : index
    %c0_8 = arith.constant 0 : index
    %c17 = arith.constant 17 : index
    %4 = vector.load %arg2[%c0_6, %c0_7, %c0_8, %c17] : memref<1x1x4x306xf32, #tpu.memory_space<vmem>>, vector<1x1x4x272xf32>
    %5 = vector.shape_cast %4 : vector<1x1x4x272xf32> to vector<4x272xf32>
    %c0_9 = arith.constant 0 : index
    %c0_10 = arith.constant 0 : index
    %c0_11 = arith.constant 0 : index
    %c18 = arith.constant 18 : index
    %6 = vector.load %arg2[%c0_9, %c0_10, %c0_11, %c18] : memref<1x1x4x306xf32, #tpu.memory_space<vmem>>, vector<1x1x4x272xf32>
    %7 = vector.shape_cast %6 : vector<1x1x4x272xf32> to vector<4x272xf32>
    %c0_12 = arith.constant 0 : index
    %c0_13 = arith.constant 0 : index
    %c0_14 = arith.constant 0 : index
    %8 = vector.load %arg3[%c0_12, %c0_13, %c0_14] : memref<4x32x4xf32, #tpu.memory_space<vmem>>, vector<1x32x4xf32>
    %9 = vector.shape_cast %8 : vector<1x32x4xf32> to vector<32x4xf32>
    %cst = arith.constant dense<0.000000e+00> : vector<32x272xf32>
    %10 = tpu.matmul %9, %1, %cst {dimension_numbers = #tpu.dot_dimension_numbers<[1], [0], [0], [1], [0, 0, 1, 1], [], []>} : vector<32x4xf32>, vector<4x272xf32>, vector<32x272xf32> -> vector<32x272xf32>
    %c1_15 = arith.constant 1 : index
    %c0_16 = arith.constant 0 : index
    %c0_17 = arith.constant 0 : index
    %11 = vector.load %arg3[%c1_15, %c0_16, %c0_17] : memref<4x32x4xf32, #tpu.memory_space<vmem>>, vector<1x32x4xf32>
    %12 = vector.shape_cast %11 : vector<1x32x4xf32> to vector<32x4xf32>
    %cst_18 = arith.constant dense<0.000000e+00> : vector<32x272xf32>
    %13 = tpu.matmul %12, %3, %cst_18 {dimension_numbers = #tpu.dot_dimension_numbers<[1], [0], [0], [1], [0, 0, 1, 1], [], []>} : vector<32x4xf32>, vector<4x272xf32>, vector<32x272xf32> -> vector<32x272xf32>
    %14 = arith.addf %10, %13 : vector<32x272xf32>
    %c2 = arith.constant 2 : index
    %c0_19 = arith.constant 0 : index
    %c0_20 = arith.constant 0 : index
    %15 = vector.load %arg3[%c2, %c0_19, %c0_20] : memref<4x32x4xf32, #tpu.memory_space<vmem>>, vector<1x32x4xf32>
    %16 = vector.shape_cast %15 : vector<1x32x4xf32> to vector<32x4xf32>
    %cst_21 = arith.constant dense<0.000000e+00> : vector<32x272xf32>
    %17 = tpu.matmul %16, %5, %cst_21 {dimension_numbers = #tpu.dot_dimension_numbers<[1], [0], [0], [1], [0, 0, 1, 1], [], []>} : vector<32x4xf32>, vector<4x272xf32>, vector<32x272xf32> -> vector<32x272xf32>
    %18 = arith.addf %14, %17 : vector<32x272xf32>
    %c3 = arith.constant 3 : index
    %c0_22 = arith.constant 0 : index
    %c0_23 = arith.constant 0 : index
    %19 = vector.load %arg3[%c3, %c0_22, %c0_23] : memref<4x32x4xf32, #tpu.memory_space<vmem>>, vector<1x32x4xf32>
    %20 = vector.shape_cast %19 : vector<1x32x4xf32> to vector<32x4xf32>
    %cst_24 = arith.constant dense<0.000000e+00> : vector<32x272xf32>
    %21 = tpu.matmul %20, %7, %cst_24 {dimension_numbers = #tpu.dot_dimension_numbers<[1], [0], [0], [1], [0, 0, 1, 1], [], []>} : vector<32x4xf32>, vector<4x272xf32>, vector<32x272xf32> -> vector<32x272xf32>
    %22 = arith.addf %18, %21 : vector<32x272xf32>
    %c0_25 = arith.constant 0 : index
    %c0_26 = arith.constant 0 : index
    %23 = vector.load %arg4[%c0_25, %c0_26] : memref<32x1xf32, #tpu.memory_space<vmem>>, vector<32x1xf32>
    %24 = vector.broadcast %23 : vector<32x1xf32> to vector<32x272xf32>
    %25 = arith.addf %22, %24 : vector<32x272xf32>
    %cst_27 = arith.constant 0.000000e+00 : f32
    %26 = vector.broadcast %cst_27 : f32 to vector<32x272xf32>
    %27 = arith.cmpf ogt, %25, %26 : vector<32x272xf32>
    %cst_28 = arith.constant 0.00999999977 : f32
    %28 = vector.broadcast %cst_28 : f32 to vector<32x272xf32>
    %29 = arith.mulf %28, %25 : vector<32x272xf32>
    %30 = arith.select %27, %25, %29 : vector<32x272xi1>, vector<32x272xf32>
    %c0_29 = arith.constant 0 : index
    %c0_30 = arith.constant 0 : index
    %c0_31 = arith.constant 0 : index
    %c0_32 = arith.constant 0 : index
    %31 = vector.load %arg5[%c0_29, %c0_30, %c0_31, %c0_32] : memref<1x1x32x272xf32, #tpu.memory_space<vmem>>, vector<1x1x32x272xf32>
    %32 = vector.shape_cast %31 : vector<1x1x32x272xf32> to vector<32x272xf32>
    %33 = vector.shape_cast %30 : vector<32x272xf32> to vector<1x1x32x272xf32>
    tpu.vector_store %arg5[%c0_29, %c0_30, %c0_31, %c0_32], %33 {strides = array<i32>} : memref<1x1x32x272xf32, #tpu.memory_space<vmem>>, vector<1x1x32x272xf32>,
    return
  }
  func.func @transform_0(%arg0: i32, %arg1: i32) -> (i32, i32, i32, i32) {
    %c0_i32 = arith.constant 0 : i32
    %c0_i32_0 = arith.constant 0 : i32
    %c0_i32_1 = arith.constant 0 : i32
    return %arg0, %arg1, %c0_i32, %c0_i32_0 : i32, i32, i32, i32
  }
  func.func @transform_1(%arg0: i32, %arg1: i32) -> (i32, i32, i32) {
    %c0_i32 = arith.constant 0 : i32
    %c0_i32_0 = arith.constant 0 : i32
    %c0_i32_1 = arith.constant 0 : i32
    %c0_i32_2 = arith.constant 0 : i32
    return %c0_i32, %c0_i32_0, %c0_i32_1 : i32, i32, i32
  }
  func.func @transform_2(%arg0: i32, %arg1: i32) -> (i32, i32) {
    %c0_i32 = arith.constant 0 : i32
    %c0_i32_0 = arith.constant 0 : i32
    %c0_i32_1 = arith.constant 0 : i32
    return %c0_i32, %c0_i32_0 : i32, i32
  }
  func.func @transform_3(%arg0: i32, %arg1: i32) -> (i32, i32, i32, i32) {
    %c0_i32 = arith.constant 0 : i32
    %c0_i32_0 = arith.constant 0 : i32
    %c0_i32_1 = arith.constant 0 : i32
    return %arg0, %arg1, %c0_i32, %c0_i32_0 : i32, i32, i32, i32
  }
}

</mosaic_0001>

<llo_original>
// kernel: tile.8
$region0: #{tile.8}
  #allocation2 [shape = 's32[1]{0}', space=sflag, size = 0x4, scoped, tag = 'scoped memory for tile.8']
  %s0 = inlined_call_operand.hbm [shape: f32[8], index: 0, kind: input, shape index: {}]
  %s1 = inlined_call_operand.vmem [shape: f32[4,8], index: 1, kind: output, shape index: {}]
  $region1: #{tile.8} parent=0
    #allocation0 [shape = 'u8[512]{0}', space=vmem, size = 0x400, scoped, tag = 'operand span for operand 0']
    #allocation1 [shape = 's32[1]{0}', space=sflag, size = 0x4, scoped, tag = 'scoped memory for tile.8']
    %2 = vsyncpa [#allocation1], 0
    // Predicated region
    $region2: #{tile.8} parent=1 // pred_check
      _
    $region3: #{tile.8} parent=1 // pred_check_branch
      %4 = sbr.rel (0) target = $region5
    $region4: #{tile.8} parent=1 // pred_region
      %s6 = ssub.s32 16, 16
      %7 = vsyncadd [#allocation1], %s6
      %s9 = sshll.u32 [#allocation0], 4
      %s10 = int_to_ptr.vmem [resolvable:$true] %s9
      %12 = dma.hbm_to_vmem [thread:$0]  %s0, 16, %s10, [#allocation1]
    $region5: #{tile.8} parent=1 // pred_fallthru
      _
    // Predicated region
    $region6: #{tile.8} parent=1 // pred_check
      _
    $region7: #{tile.8} parent=1 // pred_check_branch
      %14 = sbr.rel (0) target = $region9
    $region8: #{tile.8} parent=1 // pred_region
      %15 = dma.done [#allocation1], 16
    $region9: #{tile.8} parent=1 // pred_fallthru
      _
    %v16 = vld [vmem:[#allocation0] ss:$0 sm:$0xff]
    %17 = vst [vmem:[%s1] sm:$0xf] %v16
    %18 = vsyncpa [#allocation1], 1

// kernel: tile.0
$region0: #{tile.0}
  %s0 = inlined_call_operand.vmem [shape: f32[4,8], index: 0, kind: input, shape index: {}]
  %s1 = inlined_call_operand.vmem [shape: f32[32,1], index: 1, kind: output, shape index: {}]
  $region1: #{tile.0} parent=0
    #allocation0 [shape = 'u8[4096]{0}', space=vmem, size = 0x1000, scoped, tag = 'scoped mem for input reshape']
    %s3 = sshllo.u32 0, 4
    %v4 = vld [vmem:[%s0] sm:%s3]
    %5 = vst [vmem:[#allocation0] sm:%s3] %v4
    %v6 = vld [vmem:[#allocation0] sm:$0xf]
    %vm7 = vcmask 7168
    %8 = vst.msk [vmem:[%s1] ss:$8 sm:$0xf] %vm7, %v6
    %v9 = vld [vmem:[#allocation0] sm:$0xf]
    %10 = vrot.lane.b32.xlu0 %v9, 127
    %v11 = vpop.permute.xlu0 %10
    %vm12 = vcmask 7168
    %s13 = scalar_lea.vmem %s1, 1
    %14 = vst.msk [vmem:[%s13] ss:$8 sm:$0xf] %vm12, %v11
    %v15 = vld [vmem:[#allocation0] sm:$0xf]
    %16 = vrot.lane.b32.xlu0 %v15, 126
    %v17 = vpop.permute.xlu0 %16
    %vm18 = vcmask 7168
    %s19 = scalar_lea.vmem %s1, 2
    %20 = vst.msk [vmem:[%s19] ss:$8 sm:$0xf] %vm18, %v17
    %v21 = vld [vmem:[#allocation0] sm:$0xf]
    %22 = vrot.lane.b32.xlu0 %v21, 125
    %v23 = vpop.permute.xlu0 %22
    %vm24 = vcmask 7168
    %s25 = scalar_lea.vmem %s1, 3
    %26 = vst.msk [vmem:[%s25] ss:$8 sm:$0xf] %vm24, %v23
    %v27 = vld [vmem:[#allocation0] sm:$0xf]
    %28 = vrot.lane.b32.xlu0 %v27, 124
    %v29 = vpop.permute.xlu0 %28
    %vm30 = vcmask 7168
    %s31 = scalar_lea.vmem %s1, 4
    %32 = vst.msk [vmem:[%s31] ss:$8 sm:$0xf] %vm30, %v29
    %v33 = vld [vmem:[#allocation0] sm:$0xf]
    %34 = vrot.lane.b32.xlu0 %v33, 123
    %v35 = vpop.permute.xlu0 %34
    %vm36 = vcmask 7168
    %s37 = scalar_lea.vmem %s1, 5
    %38 = vst.msk [vmem:[%s37] ss:$8 sm:$0xf] %vm36, %v35
    %v39 = vld [vmem:[#allocation0] sm:$0xf]
    %40 = vrot.lane.b32.xlu0 %v39, 122
    %v41 = vpop.permute.xlu0 %40
    %vm42 = vcmask 7168
    %s43 = scalar_lea.vmem %s1, 6
    %44 = vst.msk [vmem:[%s43] ss:$8 sm:$0xf] %vm42, %v41
    %v45 = vld [vmem:[#allocation0] sm:$0xf]
    %46 = vrot.lane.b32.xlu0 %v45, 121
    %v47 = vpop.permute.xlu0 %46
    %vm48 = vcmask 7168
    %s49 = scalar_lea.vmem %s1, 7
    %50 = vst.msk [vmem:[%s49] ss:$8 sm:$0xf] %vm48, %v47

// kernel: upsampling_forward.1
$region0: #{upsampling_forward.1}
  #allocation0 [shape = 'u32[]', space=smem, size = 0x4, offset = 0x4, fixed_abs, tag = 'smem constant byte address 0x4 - core index']
  #allocation1 [shape = 'u32[144,128]{1,0:T(1,128)}', space=vmem, size = 0x12000, scoped, tag = 'internal scratch']
  %s0 = inlined_call_operand.vmem [shape: f32[2,1,4,306], index: 0, kind: input, shape index: {}]
  %s1 = inlined_call_operand.vmem [shape: f32[4,32,4], index: 1, kind: input, shape index: {}]
  %s2 = inlined_call_operand.vmem [shape: f32[32,1], index: 2, kind: input, shape index: {}]
  %s3 = inlined_call_operand.vmem [shape: f32[2,1,32,272], index: 3, kind: output, shape index: {}]
  %s4 = sld [smem:[#allocation0]]
  $region45: #{upsampling_forward.1} parent=0
    _
  %s6 = ssub.s32 1, %s4
  %s7 = scalar_select 0, %s6, %s4
  loop: start=0, step=1, limit=4
  $region2: #{upsampling_forward.1} parent=0 // loop_pre_header
    _
  $region3: #{upsampling_forward.1} parent=0 // loop_header
    %s9 = sphi 0, %s13
    %p10 = scmp.ge.s32.totalorder %s9, 4
    %s16 = sphi 0, %s28
    %s17 = sphi 0, %s24
    %s18 = sphi 0, %s16
    %s19 = sphi 0, %s17
    %s20 = sphi 0, %s18
    %s21 = sphi 0, %s19
    %s33 = sphi 0, %s35
    %s36 = sphi 0, %s33
    %s37 = sphi 0, %s36
    %s53 = sphi 0, %s37
    %s57 = sphi 0, %s57
    %s59 = sphi 0, %s57
    %s60 = sphi 0, %s59
    %s74 = sphi 0, %s60
    %s78 = sphi 0, %s78
    %s80 = sphi 0, %s78
    %s81 = sphi 0, %s80
    %s95 = sphi 0, %s81
    %s103 = sphi 0, %s105
    %s106 = sphi 0, %s103
    %s107 = sphi 0, %s106
    %s123 = sphi 0, %s107
  $region4: #{upsampling_forward.1} parent=0 // loop_header_branch
    %12 = sbr.rel (%p10) target = $region8
  $region5: #{upsampling_forward.1} parent=0 // loop_body
    %s14 = ssub.s32 %s9, 1
    %s15 = ssub.s32 %s9, 2
    %s22 = sadd.s32 1, %s17
    %p23 = scmp.ge.s32.totalorder %s22, 1
    %s24 = scalar_select %p23, 0, %s22
    %s25 = sadd.s32 1, %s16
    %s26 = scalar_select %p23, %s25, %s16
    %p27 = scmp.ge.s32.totalorder %s26, 2
    %s28 = scalar_select %p27, 0, %s26
    %s29 = ssub.s32 %s16, %s28
    %s30 = ssub.s32 %s17, %s24
    %s31 = sor.u32 %s29, %s30
    %p32 = scmp.eq.s32.totalorder %s31, 0
    %s34 = sadd.s32 %s33, 1
    %s35 = scalar_select %p32, %s33, %s34
    %p38 = pneg %p32
    %p39 = scmp.eq.s32.totalorder %s9, 1
    %p40 = por %p38, %p39
    %p41 = scmp.ne.s32.totalorder %s33, %s36
    %p42 = scmp.eq.s32.totalorder %s9, 0
    %p43 = por %p41, %p42
    %p44 = scmp.ne.s32.totalorder %s33, %s36
    %p45 = scmp.eq.s32.totalorder %s14, 1
    %p46 = por %p44, %p45
    %p47 = scmp.ne.s32.totalorder %s36, %s37
    %p48 = scmp.eq.s32.totalorder %s14, 0
    %p49 = por %p47, %p48
    %p50 = scmp.ne.s32.totalorder %s36, %s37
    %p51 = scmp.eq.s32.totalorder %s15, 1
    %p52 = por %p50, %p51
    %p54 = scmp.ne.s32.totalorder %s37, %s53
    %p55 = scmp.eq.s32.totalorder %s15, 0
    %p56 = por %p54, %p55
    %s58 = sadd.s32 %s57, 1
    %p61 = scmp.eq.s32.totalorder %s9, 1
    %p62 = scmp.ne.s32.totalorder %s57, %s59
    %p63 = scmp.eq.s32.totalorder %s9, 0
    %p64 = por %p62, %p63
    %p65 = scmp.ne.s32.totalorder %s57, %s59
    %p66 = scmp.eq.s32.totalorder %s14, 1
    %p67 = por %p65, %p66
    %p68 = scmp.ne.s32.totalorder %s59, %s60
    %p69 = scmp.eq.s32.totalorder %s14, 0
    %p70 = por %p68, %p69
    %p71 = scmp.ne.s32.totalorder %s59, %s60
    %p72 = scmp.eq.s32.totalorder %s15, 1
    %p73 = por %p71, %p72
    %p75 = scmp.ne.s32.totalorder %s60, %s74
    %p76 = scmp.eq.s32.totalorder %s15, 0
    %p77 = por %p75, %p76
    %s79 = sadd.s32 %s78, 1
    %p82 = scmp.eq.s32.totalorder %s9, 1
    %p83 = scmp.ne.s32.totalorder %s78, %s80
    %p84 = scmp.eq.s32.totalorder %s9, 0
    %p85 = por %p83, %p84
    %p86 = scmp.ne.s32.totalorder %s78, %s80
    %p87 = scmp.eq.s32.totalorder %s14, 1
    %p88 = por %p86, %p87
    %p89 = scmp.ne.s32.totalorder %s80, %s81
    %p90 = scmp.eq.s32.totalorder %s14, 0
    %p91 = por %p89, %p90
    %p92 = scmp.ne.s32.totalorder %s80, %s81
    %p93 = scmp.eq.s32.totalorder %s15, 1
    %p94 = por %p92, %p93
    %p96 = scmp.ne.s32.totalorder %s81, %s95
    %p97 = scmp.eq.s32.totalorder %s15, 0
    %p98 = por %p96, %p97
    %s99 = ssub.s32 %s16, %s28
    %s100 = ssub.s32 %s17, %s24
    %s101 = sor.u32 %s99, %s100
    %p102 = scmp.eq.s32.totalorder %s101, 0
    %s104 = sadd.s32 %s103, 1
    %s105 = scalar_select %p102, %s103, %s104
    %p108 = pneg %p102
    %p109 = scmp.eq.s32.totalorder %s9, 1
    %p110 = por %p108, %p109
    %p111 = scmp.ne.s32.totalorder %s103, %s106
    %p112 = scmp.eq.s32.totalorder %s9, 0
    %p113 = por %p111, %p112
    %p114 = scmp.ne.s32.totalorder %s103, %s106
    %p115 = scmp.eq.s32.totalorder %s14, 1
    %p116 = por %p114, %p115
    %p117 = scmp.ne.s32.totalorder %s106, %s107
    %p118 = scmp.eq.s32.totalorder %s14, 0
    %p119 = por %p117, %p118
    %p120 = scmp.ne.s32.totalorder %s106, %s107
    %p121 = scmp.eq.s32.totalorder %s15, 1
    %p122 = por %p120, %p121
    %p124 = scmp.ne.s32.totalorder %s107, %s123
    %p125 = scmp.eq.s32.totalorder %s15, 0
    %p126 = por %p124, %p125
    %p127 = scmp.le.s32.totalorder 1, %s9
    %p128 = scmp.lt.s32.totalorder %s9, 3
    %p129 = pnand %p127, %p128
    %p130 = pneg %p129
    // Predicated region
    $region9: #{upsampling_forward.1} parent=5 // pred_check
      _
    $region10: #{upsampling_forward.1} parent=5 // pred_check_branch
      %132 = sbr.rel (%p129) target = $region12
    $region11: #{upsampling_forward.1} parent=5 // pred_region
      %s133 = ssub.s32 %s9, 1
      // Predicated region
      $region13: #{upsampling_forward.1} parent=11 // pred_check
        %p134 = pneg %p70
      $region14: #{upsampling_forward.1} parent=11 // pred_check_branch
        %136 = sbr.rel (%p134) target = $region16
      $region15: #{upsampling_forward.1} parent=11 // pred_region
        _
      $region16: #{upsampling_forward.1} parent=11 // pred_fallthru
        _
      // Predicated region
      $region17: #{upsampling_forward.1} parent=11 // pred_check
        %p137 = pneg %p91
      $region18: #{upsampling_forward.1} parent=11 // pred_check_branch
        %139 = sbr.rel (%p137) target = $region20
      $region19: #{upsampling_forward.1} parent=11 // pred_region
        _
      $region20: #{upsampling_forward.1} parent=11 // pred_fallthru
        _
    $region12: #{upsampling_forward.1} parent=5 // pred_fallthru
      _
    %p140 = scmp.lt.s32.totalorder %s9, 2
    // Predicated region
    $region21: #{upsampling_forward.1} parent=5 // pred_check
      %p141 = pneg %p140
    $region22: #{upsampling_forward.1} parent=5 // pred_check_branch
      %143 = sbr.rel (%p141) target = $region24
    $region23: #{upsampling_forward.1} parent=5 // pred_region
      // Predicated region
      $region25: #{upsampling_forward.1} parent=23 // pred_check
        %p144 = pneg %p43
      $region26: #{upsampling_forward.1} parent=23 // pred_check_branch
        %146 = sbr.rel (%p144) target = $region28
      $region27: #{upsampling_forward.1} parent=23 // pred_region
        %p147 = scmp.lt.s32.totalorder %s16, 1
        %s148 = scalar_select %p147, %s16, 1
        %p149 = scmp.lt.s32.totalorder %s17, 0
        %s150 = scalar_select %p149, %s17, 0
        %s151 = smul.addr %s150, 3
        %s152 = smul.addr %s148, 3
        %s153 = sadd.s32 %s151, %s152
        %s154 = smul.addr %s153, 4
        %s155 = scalar_lea.vmem %s0, %s154
      $region28: #{upsampling_forward.1} parent=23 // pred_fallthru
        _
    $region24: #{upsampling_forward.1} parent=5 // pred_fallthru
      _
    %p156 = scmp.le.s32.totalorder 1, %s9
    %p157 = scmp.lt.s32.totalorder %s9, 3
    %p158 = pnand %p156, %p157
    %p159 = pneg %p158
    // Predicated region
    $region29: #{upsampling_forward.1} parent=5 // pred_check
      _
    $region30: #{upsampling_forward.1} parent=5 // pred_check_branch
      %161 = sbr.rel (%p158) target = $region32
    $region31: #{upsampling_forward.1} parent=5 // pred_region
      %s162 = ssub.s32 %s9, 1
      %p163 = scmp.lt.s32.totalorder %s18, 1
      %s164 = scalar_select %p163, %s18, 1
      %p165 = scmp.lt.s32.totalorder %s19, 0
      %s166 = scalar_select %p165, %s19, 0
      %s167 = smul.addr %s166, 3
      %s168 = smul.addr %s164, 3
      %s169 = sadd.s32 %s167, %s168
      %s170 = smul.addr %s169, 4
      %s171 = scalar_lea.vmem %s0, %s170
      %p172 = pneg %p49
      %p173 = pneg %p46
      %p174 = pneg %p70
      %p175 = pneg %p67
      %p176 = pneg %p91
      %p177 = pneg %p88
      %p178 = pneg %p119
      %p179 = pneg %p116
      %p180 = scmp.lt.s32.totalorder %s18, 1
      %s181 = scalar_select %p180, %s18, 1
      %p182 = scmp.lt.s32.totalorder %s19, 0
      %s183 = scalar_select %p182, %s19, 0
      %s184 = smul.addr %s183, 12
      %s185 = smul.addr %s181, 12
      %s186 = sadd.s32 %s184, %s185
      %s187 = smul.addr %s186, 8
      %s188 = scalar_lea.vmem %s3, %s187
      %p189 = scmp.lt.s32.totalorder %s18, 1
      %s190 = scalar_select %p189, %s18, 1
      %p191 = scmp.lt.s32.totalorder %s19, 0
      %s192 = scalar_select %p191, %s19, 0
      %s193 = smul.addr %s192, 3
      %s194 = smul.addr %s190, 3
      %s195 = sadd.s32 %s193, %s194
      %s196 = smul.addr %s195, 4
      %s197 = scalar_lea.vmem %s0, %s196
      %p198 = scmp.lt.s32.totalorder %s18, 1
      %s199 = scalar_select %p198, %s18, 1
      %p200 = scmp.lt.s32.totalorder %s19, 0
      %s201 = scalar_select %p200, %s19, 0
      %s202 = smul.addr %s201, 12
      %s203 = smul.addr %s199, 12
      %s204 = sadd.s32 %s202, %s203
      %s205 = smul.addr %s204, 8
      %s206 = scalar_lea.vmem %s3, %s205
      %v207 = vld [vmem:[%s197] sm:$0xff]
      %v208 = vld [vmem:[%s197 + $0x8] sm:$0xf]
      %v209 = vld [vmem:[%s1] sm:$0xff]
      %v210 = vld [vmem:[%s1 + $0x8] sm:$0xff]
      %v211 = vld [vmem:[%s1 + $0x10] sm:$0xff]
      %v212 = vld [vmem:[%s1 + $0x18] sm:$0xff]
      %s213 = scalar_lea.vmem %s1, 32
      %v214 = vld [vmem:[%s213] sm:$0xff]
      %v215 = vld [vmem:[%s213 + $0x8] sm:$0xff]
      %v216 = vld [vmem:[%s213 + $0x10] sm:$0xff]
      %v217 = vld [vmem:[%s213 + $0x18] sm:$0xff]
      %v220 = vcombine.high %v207, %v207
      %221 = vrot.lane.b32.xlu0 %v207, 127
      %v222 = vpop.permute.xlu0 %221
      %223 = vrot.lane.b32.xlu0 %v220, 127
      %v224 = vpop.permute.xlu0 %223
      %225 = vrot.lane.b32.xlu0 %v208, 127
      %v226 = vpop.permute.xlu0 %225
      %vm227 = vcmask 1039360
      %v228 = vsel %vm227, %v222, %v224
      %v229 = vsel %vm227, %v224, %v226
      %vm230 = vcmask 31744
      %v232 = vsel %vm230, %v214, 0
      %v235 = vsel %vm230, %v215, 0
      %v238 = vsel %vm230, %v216, 0
      %v241 = vsel %vm230, %v217, 0
      %vm243 = vcmask 1043456
      %v244 = vsel %vm243, %v228, 0
      %v246 = vsel %vm243, %v229, 0
      %v248 = vsel %vm243, %v226, 0
      %250 = vmatprep.subr.mxu0 %v246
      %251 = vmatpush1.msra.mxu0 %v244
      %252 = vmatprep.subr.mxu0 0.0
      %253 = vmatpush1.msra.mxu0 0.0
      %254 = vmatprep.subr.mxu0 0.0
      %255 = vmatpush1.msra.mxu0 0.0
      %256 = vmatprep.subr.mxu0 0.0
      %257 = vmatpush1.msra.mxu0 0.0
      %258 = vmatprep.subr.mxu0 0.0
      %259 = vmatpush1.msra.mxu0 0.0
      %260 = vmatprep.subr.mxu0 0.0
      %261 = vmatpush1.msra.mxu0 0.0
      %262 = vmatprep.subr.mxu0 0.0
      %263 = vmatpush1.msra.mxu0 0.0
      %264 = vmatprep.subr.mxu0 0.0
      %265 = vmatpush1.msra.mxu0 0.0
      %266 = vmatprep.subr.mxu0 0.0
      %267 = vmatpush1.msra.mxu0 0.0
      %268 = vmatprep.subr.mxu0 0.0
      %269 = vmatpush1.msra.mxu0 0.0
      %270 = vmatprep.subr.mxu0 0.0
      %271 = vmatpush1.msra.mxu0 0.0
      %272 = vmatprep.subr.mxu0 0.0
      %273 = vmatpush1.msra.mxu0 0.0
      %274 = vmatprep.subr.mxu0 0.0
      %275 = vmatpush1.msra.mxu0 0.0
      %276 = vmatprep.subr.mxu0 0.0
      %277 = vmatpush1.msra.mxu0 0.0
      %278 = vmatprep.subr.mxu0 0.0
      %279 = vmatpush1.msra.mxu0 0.0
      %280 = vmatprep.subr.mxu0 0.0
      %281 = vmatpush1.msra.mxu0 0.0
      %282 = vmatprep.subr.mxu0 0.0
      %283 = vmatpush1.msra.mxu0 0.0
      %284 = vmatprep.subr.mxu0 0.0
      %285 = vmatpush1.msra.mxu0 0.0
      %286 = vmatprep.subr.mxu0 0.0
      %287 = vmatpush1.msra.mxu0 0.0
      %288 = vmatprep.subr.mxu0 0.0
      %289 = vmatpush1.msra.mxu0 0.0
      %290 = vmatprep.subr.mxu0 0.0
      %291 = vmatpush1.msra.mxu0 0.0
      %292 = vmatprep.subr.mxu0 0.0
      %293 = vmatpush1.msra.mxu0 0.0
      %294 = vmatprep.subr.mxu0 0.0
      %295 = vmatpush1.msra.mxu0 0.0
      %296 = vmatprep.subr.mxu0 0.0
      %297 = vmatpush1.msra.mxu0 0.0
      %298 = vmatprep.subr.mxu0 0.0
      %299 = vmatpush1.msra.mxu0 0.0
      %300 = vmatprep.subr.mxu0 0.0
      %301 = vmatpush1.msra.mxu0 0.0
      %302 = vmatprep.subr.mxu0 0.0
      %303 = vmatpush1.msra.mxu0 0.0
      %304 = vmatprep.subr.mxu0 0.0
      %305 = vmatpush1.msra.mxu0 0.0
      %306 = vmatprep.subr.mxu0 0.0
      %307 = vmatpush1.msra.mxu0 0.0
      %308 = vmatprep.subr.mxu0 0.0
      %309 = vmatpush1.msra.mxu0 0.0
      %310 = vmatprep.subr.mxu0 0.0
      %311 = vmatpush1.msra.mxu0 0.0
      %312 = vmatprep.subr.mxu0 0.0
      %313 = vmatpush1.msra.mxu0 0.0
      %314 = vmatprep.mubr.f32.mxu0 0.0
      %315 = vmatmul.mubr.f32.gmra.mrb[0].mxu0 %v232
      %v316 = vpop.f32.mrb[0].mxu0
      %v317 = vadd.f32 0.0, %v316
      %v318 = vpop.f32.mrb[0].mxu0
      %v319 = vadd.f32 0.0, %v318
      %320 = vmatprep.mubr.f32.mxu0 0.0
      %321 = vmatmul.mubr.f32.gmra.mrb[0].mxu0 %v235
      %v322 = vpop.f32.mrb[0].mxu0
      %v323 = vadd.f32 0.0, %v322
      %v324 = vpop.f32.mrb[0].mxu0
      %v325 = vadd.f32 0.0, %v324
      %326 = vmatprep.mubr.f32.mxu0 0.0
      %327 = vmatmul.mubr.f32.gmra.mrb[0].mxu0 %v238
      %v328 = vpop.f32.mrb[0].mxu0
      %v329 = vadd.f32 0.0, %v328
      %v330 = vpop.f32.mrb[0].mxu0
      %v331 = vadd.f32 0.0, %v330
      %332 = vmatprep.mubr.f32.mxu0 0.0
      %333 = vmatmul.mubr.f32.gmra.mrb[0].mxu0 %v241
      %v334 = vpop.f32.mrb[0].mxu0
      %v335 = vadd.f32 0.0, %v334
      %v336 = vpop.f32.mrb[0].mxu0
      %v337 = vadd.f32 0.0, %v336
      %338 = vdwg.mxu0
      %339 = vmatprep.subr.mxu0 0.0
      %340 = vmatpush1.msra.mxu0 %v248
      %341 = vmatprep.subr.mxu0 0.0
      %342 = vmatpush1.msra.mxu0 0.0
      %343 = vmatprep.subr.mxu0 0.0
      %344 = vmatpush1.msra.mxu0 0.0
      %345 = vmatprep.subr.mxu0 0.0
      %346 = vmatpush1.msra.mxu0 0.0
      %347 = vmatprep.subr.mxu0 0.0
      %348 = vmatpush1.msra.mxu0 0.0
      %349 = vmatprep.subr.mxu0 0.0
      %350 = vmatpush1.msra.mxu0 0.0
      %351 = vmatprep.subr.mxu0 0.0
      %352 = vmatpush1.msra.mxu0 0.0
      %353 = vmatprep.subr.mxu0 0.0
      %354 = vmatpush1.msra.mxu0 0.0
      %355 = vmatprep.subr.mxu0 0.0
      %356 = vmatpush1.msra.mxu0 0.0
      %357 = vmatprep.subr.mxu0 0.0
      %358 = vmatpush1.msra.mxu0 0.0
      %359 = vmatprep.subr.mxu0 0.0
      %360 = vmatpush1.msra.mxu0 0.0
      %361 = vmatprep.subr.mxu0 0.0
      %362 = vmatpush1.msra.mxu0 0.0
      %363 = vmatprep.subr.mxu0 0.0
      %364 = vmatpush1.msra.mxu0 0.0
      %365 = vmatprep.subr.mxu0 0.0
      %366 = vmatpush1.msra.mxu0 0.0
      %367 = vmatprep.subr.mxu0 0.0
      %368 = vmatpush1.msra.mxu0 0.0
      %369 = vmatprep.subr.mxu0 0.0
      %370 = vmatpush1.msra.mxu0 0.0
      %371 = vmatprep.subr.mxu0 0.0
      %372 = vmatpush1.msra.mxu0 0.0
      %373 = vmatprep.subr.mxu0 0.0
      %374 = vmatpush1.msra.mxu0 0.0
      %375 = vmatprep.subr.mxu0 0.0
      %376 = vmatpush1.msra.mxu0 0.0
      %377 = vmatprep.subr.mxu0 0.0
      %378 = vmatpush1.msra.mxu0 0.0
      %379 = vmatprep.subr.mxu0 0.0
      %380 = vmatpush1.msra.mxu0 0.0
      %381 = vmatprep.subr.mxu0 0.0
      %382 = vmatpush1.msra.mxu0 0.0
      %383 = vmatprep.subr.mxu0 0.0
      %384 = vmatpush1.msra.mxu0 0.0
      %385 = vmatprep.subr.mxu0 0.0
      %386 = vmatpush1.msra.mxu0 0.0
      %387 = vmatprep.subr.mxu0 0.0
      %388 = vmatpush1.msra.mxu0 0.0
      %389 = vmatprep.subr.mxu0 0.0
      %390 = vmatpush1.msra.mxu0 0.0
      %391 = vmatprep.subr.mxu0 0.0
      %392 = vmatpush1.msra.mxu0 0.0
      %393 = vmatprep.subr.mxu0 0.0
      %394 = vmatpush1.msra.mxu0 0.0
      %395 = vmatprep.subr.mxu0 0.0
      %396 = vmatpush1.msra.mxu0 0.0
      %397 = vmatprep.subr.mxu0 0.0
      %398 = vmatpush1.msra.mxu0 0.0
      %399 = vmatprep.subr.mxu0 0.0
      %400 = vmatpush1.msra.mxu0 0.0
      %401 = vmatprep.subr.mxu0 0.0
      %402 = vmatpush1.msra.mxu0 0.0
      %403 = vmatprep.mubr.f32.mxu0 0.0
      %404 = vmatmul.mubr.f32.gmra.mrb[0].mxu0 %v232
      %v405 = vpop.f32.mrb[0].mxu0
      %v406 = vadd.f32 0.0, %v405
      %v407 = vpop.f32.mrb[0].mxu0
      %408 = vmatprep.mubr.f32.mxu0 0.0
      %409 = vmatmul.mubr.f32.gmra.mrb[0].mxu0 %v235
      %v410 = vpop.f32.mrb[0].mxu0
      %v411 = vadd.f32 0.0, %v410
      %v412 = vpop.f32.mrb[0].mxu0
      %413 = vmatprep.mubr.f32.mxu0 0.0
      %414 = vmatmul.mubr.f32.gmra.mrb[0].mxu0 %v238
      %v415 = vpop.f32.mrb[0].mxu0
      %v416 = vadd.f32 0.0, %v415
      %v417 = vpop.f32.mrb[0].mxu0
      %418 = vmatprep.mubr.f32.mxu0 0.0
      %419 = vmatmul.mubr.f32.gmra.mrb[0].mxu0 %v241
      %v420 = vpop.f32.mrb[0].mxu0
      %v421 = vadd.f32 0.0, %v420
      %v422 = vpop.f32.mrb[0].mxu0
      %423 = vdwg.mxu0
      %v425 = vsel %vm230, %v209, 0
      %v428 = vsel %vm230, %v210, 0
      %v431 = vsel %vm230, %v211, 0
      %v434 = vsel %vm230, %v212, 0
      %v436 = vsel %vm243, %v207, 0
      %v438 = vsel %vm243, %v220, 0
      %v440 = vsel %vm243, %v208, 0
      %442 = vmatprep.subr.mxu0 %v438
      %443 = vmatpush1.msra.mxu0 %v436
      %444 = vmatprep.subr.mxu0 0.0
      %445 = vmatpush1.msra.mxu0 0.0
      %446 = vmatprep.subr.mxu0 0.0
      %447 = vmatpush1.msra.mxu0 0.0
      %448 = vmatprep.subr.mxu0 0.0
      %449 = vmatpush1.msra.mxu0 0.0
      %450 = vmatprep.subr.mxu0 0.0
      %451 = vmatpush1.msra.mxu0 0.0
      %452 = vmatprep.subr.mxu0 0.0
      %453 = vmatpush1.msra.mxu0 0.0
      %454 = vmatprep.subr.mxu0 0.0
      %455 = vmatpush1.msra.mxu0 0.0
      %456 = vmatprep.subr.mxu0 0.0
      %457 = vmatpush1.msra.mxu0 0.0
      %458 = vmatprep.subr.mxu0 0.0
      %459 = vmatpush1.msra.mxu0 0.0
      %460 = vmatprep.subr.mxu0 0.0
      %461 = vmatpush1.msra.mxu0 0.0
      %462 = vmatprep.subr.mxu0 0.0
      %463 = vmatpush1.msra.mxu0 0.0
      %464 = vmatprep.subr.mxu0 0.0
      %465 = vmatpush1.msra.mxu0 0.0
      %466 = vmatprep.subr.mxu0 0.0
      %467 = vmatpush1.msra.mxu0 0.0
      %468 = vmatprep.subr.mxu0 0.0
      %469 = vmatpush1.msra.mxu0 0.0
      %470 = vmatprep.subr.mxu0 0.0
      %471 = vmatpush1.msra.mxu0 0.0
      %472 = vmatprep.subr.mxu0 0.0
      %473 = vmatpush1.msra.mxu0 0.0
      %474 = vmatprep.subr.mxu0 0.0
      %475 = vmatpush1.msra.mxu0 0.0
      %476 = vmatprep.subr.mxu0 0.0
      %477 = vmatpush1.msra.mxu0 0.0
      %478 = vmatprep.subr.mxu0 0.0
      %479 = vmatpush1.msra.mxu0 0.0
      %480 = vmatprep.subr.mxu0 0.0
      %481 = vmatpush1.msra.mxu0 0.0
      %482 = vmatprep.subr.mxu0 0.0
      %483 = vmatpush1.msra.mxu0 0.0
      %484 = vmatprep.subr.mxu0 0.0
      %485 = vmatpush1.msra.mxu0 0.0
      %486 = vmatprep.subr.mxu0 0.0
      %487 = vmatpush1.msra.mxu0 0.0
      %488 = vmatprep.subr.mxu0 0.0
      %489 = vmatpush1.msra.mxu0 0.0
      %490 = vmatprep.subr.mxu0 0.0
      %491 = vmatpush1.msra.mxu0 0.0
      %492 = vmatprep.subr.mxu0 0.0
      %493 = vmatpush1.msra.mxu0 0.0
      %494 = vmatprep.subr.mxu0 0.0
      %495 = vmatpush1.msra.mxu0 0.0
      %496 = vmatprep.subr.mxu0 0.0
      %497 = vmatpush1.msra.mxu0 0.0
      %498 = vmatprep.subr.mxu0 0.0
      %499 = vmatpush1.msra.mxu0 0.0
      %500 = vmatprep.subr.mxu0 0.0
      %501 = vmatpush1.msra.mxu0 0.0
      %502 = vmatprep.subr.mxu0 0.0
      %503 = vmatpush1.msra.mxu0 0.0
      %504 = vmatprep.subr.mxu0 0.0
      %505 = vmatpush1.msra.mxu0 0.0
      %506 = vmatprep.mubr.f32.mxu0 0.0
      %507 = vmatmul.mubr.f32.gmra.mrb[0].mxu0 %v425
      %v508 = vpop.f32.mrb[0].mxu0
      %v509 = vadd.f32 %v317, %v508
      %v510 = vpop.f32.mrb[0].mxu0
      %v511 = vadd.f32 %v319, %v510
      %512 = vmatprep.mubr.f32.mxu0 0.0
      %513 = vmatmul.mubr.f32.gmra.mrb[0].mxu0 %v428
      %v514 = vpop.f32.mrb[0].mxu0
      %v515 = vadd.f32 %v323, %v514
      %v516 = vpop.f32.mrb[0].mxu0
      %v517 = vadd.f32 %v325, %v516
      %518 = vmatprep.mubr.f32.mxu0 0.0
      %519 = vmatmul.mubr.f32.gmra.mrb[0].mxu0 %v431
      %v520 = vpop.f32.mrb[0].mxu0
      %v521 = vadd.f32 %v329, %v520
      %v522 = vpop.f32.mrb[0].mxu0
      %v523 = vadd.f32 %v331, %v522
      %524 = vmatprep.mubr.f32.mxu0 0.0
      %525 = vmatmul.mubr.f32.gmra.mrb[0].mxu0 %v434
      %v526 = vpop.f32.mrb[0].mxu0
      %v527 = vadd.f32 %v335, %v526
      %v528 = vpop.f32.mrb[0].mxu0
      %v529 = vadd.f32 %v337, %v528
      %530 = vdwg.mxu0
      %531 = vmatprep.subr.mxu0 0.0
      %532 = vmatpush1.msra.mxu0 %v440
      %533 = vmatprep.subr.mxu0 0.0
      %534 = vmatpush1.msra.mxu0 0.0
      %535 = vmatprep.subr.mxu0 0.0
      %536 = vmatpush1.msra.mxu0 0.0
      %537 = vmatprep.subr.mxu0 0.0
      %538 = vmatpush1.msra.mxu0 0.0
      %539 = vmatprep.subr.mxu0 0.0
      %540 = vmatpush1.msra.mxu0 0.0
      %541 = vmatprep.subr.mxu0 0.0
      %542 = vmatpush1.msra.mxu0 0.0
      %543 = vmatprep.subr.mxu0 0.0
      %544 = vmatpush1.msra.mxu0 0.0
      %545 = vmatprep.subr.mxu0 0.0
      %546 = vmatpush1.msra.mxu0 0.0
      %547 = vmatprep.subr.mxu0 0.0
      %548 = vmatpush1.msra.mxu0 0.0
      %549 = vmatprep.subr.mxu0 0.0
      %550 = vmatpush1.msra.mxu0 0.0
      %551 = vmatprep.subr.mxu0 0.0
      %552 = vmatpush1.msra.mxu0 0.0
      %553 = vmatprep.subr.mxu0 0.0
      %554 = vmatpush1.msra.mxu0 0.0
      %555 = vmatprep.subr.mxu0 0.0
      %556 = vmatpush1.msra.mxu0 0.0
      %557 = vmatprep.subr.mxu0 0.0
      %558 = vmatpush1.msra.mxu0 0.0
      %559 = vmatprep.subr.mxu0 0.0
      %560 = vmatpush1.msra.mxu0 0.0
      %561 = vmatprep.subr.mxu0 0.0
      %562 = vmatpush1.msra.mxu0 0.0
      %563 = vmatprep.subr.mxu0 0.0
      %564 = vmatpush1.msra.mxu0 0.0
      %565 = vmatprep.subr.mxu0 0.0
      %566 = vmatpush1.msra.mxu0 0.0
      %567 = vmatprep.subr.mxu0 0.0
      %568 = vmatpush1.msra.mxu0 0.0
      %569 = vmatprep.subr.mxu0 0.0
      %570 = vmatpush1.msra.mxu0 0.0
      %571 = vmatprep.subr.mxu0 0.0
      %572 = vmatpush1.msra.mxu0 0.0
      %573 = vmatprep.subr.mxu0 0.0
      %574 = vmatpush1.msra.mxu0 0.0
      %575 = vmatprep.subr.mxu0 0.0
      %576 = vmatpush1.msra.mxu0 0.0
      %577 = vmatprep.subr.mxu0 0.0
      %578 = vmatpush1.msra.mxu0 0.0
      %579 = vmatprep.subr.mxu0 0.0
      %580 = vmatpush1.msra.mxu0 0.0
      %581 = vmatprep.subr.mxu0 0.0
      %582 = vmatpush1.msra.mxu0 0.0
      %583 = vmatprep.subr.mxu0 0.0
      %584 = vmatpush1.msra.mxu0 0.0
      %585 = vmatprep.subr.mxu0 0.0
      %586 = vmatpush1.msra.mxu0 0.0
      %587 = vmatprep.subr.mxu0 0.0
      %588 = vmatpush1.msra.mxu0 0.0
      %589 = vmatprep.subr.mxu0 0.0
      %590 = vmatpush1.msra.mxu0 0.0
      %591 = vmatprep.subr.mxu0 0.0
      %592 = vmatpush1.msra.mxu0 0.0
      %593 = vmatprep.subr.mxu0 0.0
      %594 = vmatpush1.msra.mxu0 0.0
      %595 = vmatprep.mubr.f32.mxu0 0.0
      %596 = vmatmul.mubr.f32.gmra.mrb[0].mxu0 %v425
      %v597 = vpop.f32.mrb[0].mxu0
      %v598 = vadd.f32 %v406, %v597
      %v599 = vpop.f32.mrb[0].mxu0
      %600 = vmatprep.mubr.f32.mxu0 0.0
      %601 = vmatmul.mubr.f32.gmra.mrb[0].mxu0 %v428
      %v602 = vpop.f32.mrb[0].mxu0
      %v603 = vadd.f32 %v411, %v602
      %v604 = vpop.f32.mrb[0].mxu0
      %605 = vmatprep.mubr.f32.mxu0 0.0
      %606 = vmatmul.mubr.f32.gmra.mrb[0].mxu0 %v431
      %v607 = vpop.f32.mrb[0].mxu0
      %v608 = vadd.f32 %v416, %v607
      %v609 = vpop.f32.mrb[0].mxu0
      %610 = vmatprep.mubr.f32.mxu0 0.0
      %611 = vmatmul.mubr.f32.gmra.mrb[0].mxu0 %v434
      %v612 = vpop.f32.mrb[0].mxu0
      %v613 = vadd.f32 %v421, %v612
      %v614 = vpop.f32.mrb[0].mxu0
      %615 = vdwg.mxu0
      %s616 = scalar_lea.vmem %s1, 64
      %v617 = vld [vmem:[%s616] sm:$0xff]
      %v618 = vld [vmem:[%s616 + $0x8] sm:$0xff]
      %v619 = vld [vmem:[%s616 + $0x10] sm:$0xff]
      %v620 = vld [vmem:[%s616 + $0x18] sm:$0xff]
      %621 = vrot.lane.b32.xlu0 %v207, 111
      %v622 = vpop.permute.xlu0 %621
      %623 = vrot.lane.b32.xlu0 %v220, 111
      %v624 = vpop.permute.xlu0 %623
      %625 = vrot.lane.b32.xlu0 %v208, 111
      %v626 = vpop.permute.xlu0 %625
      %vm627 = vcmask 908288
      %v628 = vsel %vm627, %v622, %v624
      %v629 = vsel %vm627, %v624, %v626
      %v631 = vsel %vm230, %v617, 0
      %v634 = vsel %vm230, %v618, 0
      %v637 = vsel %vm230, %v619, 0
      %v640 = vsel %vm230, %v620, 0
      %v642 = vsel %vm243, %v628, 0
      %v644 = vsel %vm243, %v629, 0
      %v646 = vsel %vm243, %v626, 0
      %648 = vmatprep.subr.mxu0 %v644
      %649 = vmatpush1.msra.mxu0 %v642
      %650 = vmatprep.subr.mxu0 0.0
      %651 = vmatpush1.msra.mxu0 0.0
      %652 = vmatprep.subr.mxu0 0.0
      %653 = vmatpush1.msra.mxu0 0.0
      %654 = vmatprep.subr.mxu0 0.0
      %655 = vmatpush1.msra.mxu0 0.0
      %656 = vmatprep.subr.mxu0 0.0
      %657 = vmatpush1.msra.mxu0 0.0
      %658 = vmatprep.subr.mxu0 0.0
      %659 = vmatpush1.msra.mxu0 0.0
      %660 = vmatprep.subr.mxu0 0.0
      %661 = vmatpush1.msra.mxu0 0.0
      %662 = vmatprep.subr.mxu0 0.0
      %663 = vmatpush1.msra.mxu0 0.0
      %664 = vmatprep.subr.mxu0 0.0
      %665 = vmatpush1.msra.mxu0 0.0
      %666 = vmatprep.subr.mxu0 0.0
      %667 = vmatpush1.msra.mxu0 0.0
      %668 = vmatprep.subr.mxu0 0.0
      %669 = vmatpush1.msra.mxu0 0.0
      %670 = vmatprep.subr.mxu0 0.0
      %671 = vmatpush1.msra.mxu0 0.0
      %672 = vmatprep.subr.mxu0 0.0
      %673 = vmatpush1.msra.mxu0 0.0
      %674 = vmatprep.subr.mxu0 0.0
      %675 = vmatpush1.msra.mxu0 0.0
      %676 = vmatprep.subr.mxu0 0.0
      %677 = vmatpush1.msra.mxu0 0.0
      %678 = vmatprep.subr.mxu0 0.0
      %679 = vmatpush1.msra.mxu0 0.0
      %680 = vmatprep.subr.mxu0 0.0
      %681 = vmatpush1.msra.mxu0 0.0
      %682 = vmatprep.subr.mxu0 0.0
      %683 = vmatpush1.msra.mxu0 0.0
      %684 = vmatprep.subr.mxu0 0.0
      %685 = vmatpush1.msra.mxu0 0.0
      %686 = vmatprep.subr.mxu0 0.0
      %687 = vmatpush1.msra.mxu0 0.0
      %688 = vmatprep.subr.mxu0 0.0
      %689 = vmatpush1.msra.mxu0 0.0
      %690 = vmatprep.subr.mxu0 0.0
      %691 = vmatpush1.msra.mxu0 0.0
      %692 = vmatprep.subr.mxu0 0.0
      %693 = vmatpush1.msra.mxu0 0.0
      %694 = vmatprep.subr.mxu0 0.0
      %695 = vmatpush1.msra.mxu0 0.0
      %696 = vmatprep.subr.mxu0 0.0
      %697 = vmatpush1.msra.mxu0 0.0
      %698 = vmatprep.subr.mxu0 0.0
      %699 = vmatpush1.msra.mxu0 0.0
      %700 = vmatprep.subr.mxu0 0.0
      %701 = vmatpush1.msra.mxu0 0.0
      %702 = vmatprep.subr.mxu0 0.0
      %703 = vmatpush1.msra.mxu0 0.0
      %704 = vmatprep.subr.mxu0 0.0
      %705 = vmatpush1.msra.mxu0 0.0
      %706 = vmatprep.subr.mxu0 0.0
      %707 = vmatpush1.msra.mxu0 0.0
      %708 = vmatprep.subr.mxu0 0.0
      %709 = vmatpush1.msra.mxu0 0.0
      %710 = vmatprep.subr.mxu0 0.0
      %711 = vmatpush1.msra.mxu0 0.0
      %712 = vmatprep.mubr.f32.mxu0 0.0
      %713 = vmatmul.mubr.f32.gmra.mrb[0].mxu0 %v631
      %v714 = vpop.f32.mrb[0].mxu0
      %v715 = vadd.f32 0.0, %v714
      %v716 = vpop.f32.mrb[0].mxu0
      %v717 = vadd.f32 0.0, %v716
      %718 = vmatprep.mubr.f32.mxu0 0.0
      %719 = vmatmul.mubr.f32.gmra.mrb[0].mxu0 %v634
      %v720 = vpop.f32.mrb[0].mxu0
      %v721 = vadd.f32 0.0, %v720
      %v722 = vpop.f32.mrb[0].mxu0
      %v723 = vadd.f32 0.0, %v722
      %724 = vmatprep.mubr.f32.mxu0 0.0
      %725 = vmatmul.mubr.f32.gmra.mrb[0].mxu0 %v637
      %v726 = vpop.f32.mrb[0].mxu0
      %v727 = vadd.f32 0.0, %v726
      %v728 = vpop.f32.mrb[0].mxu0
      %v729 = vadd.f32 0.0, %v728
      %730 = vmatprep.mubr.f32.mxu0 0.0
      %731 = vmatmul.mubr.f32.gmra.mrb[0].mxu0 %v640
      %v732 = vpop.f32.mrb[0].mxu0
      %v733 = vadd.f32 0.0, %v732
      %v734 = vpop.f32.mrb[0].mxu0
      %v735 = vadd.f32 0.0, %v734
      %736 = vdwg.mxu0
      %737 = vmatprep.subr.mxu0 0.0
      %738 = vmatpush1.msra.mxu0 %v646
      %739 = vmatprep.subr.mxu0 0.0
      %740 = vmatpush1.msra.mxu0 0.0
      %741 = vmatprep.subr.mxu0 0.0
      %742 = vmatpush1.msra.mxu0 0.0
      %743 = vmatprep.subr.mxu0 0.0
      %744 = vmatpush1.msra.mxu0 0.0
      %745 = vmatprep.subr.mxu0 0.0
      %746 = vmatpush1.msra.mxu0 0.0
      %747 = vmatprep.subr.mxu0 0.0
      %748 = vmatpush1.msra.mxu0 0.0
      %749 = vmatprep.subr.mxu0 0.0
      %750 = vmatpush1.msra.mxu0 0.0
      %751 = vmatprep.subr.mxu0 0.0
      %752 = vmatpush1.msra.mxu0 0.0
      %753 = vmatprep.subr.mxu0 0.0
      %754 = vmatpush1.msra.mxu0 0.0
      %755 = vmatprep.subr.mxu0 0.0
      %756 = vmatpush1.msra.mxu0 0.0
      %757 = vmatprep.subr.mxu0 0.0
      %758 = vmatpush1.msra.mxu0 0.0
      %759 = vmatprep.subr.mxu0 0.0
      %760 = vmatpush1.msra.mxu0 0.0
      %761 = vmatprep.subr.mxu0 0.0
      %762 = vmatpush1.msra.mxu0 0.0
      %763 = vmatprep.subr.mxu0 0.0
      %764 = vmatpush1.msra.mxu0 0.0
      %765 = vmatprep.subr.mxu0 0.0
      %766 = vmatpush1.msra.mxu0 0.0
      %767 = vmatprep.subr.mxu0 0.0
      %768 = vmatpush1.msra.mxu0 0.0
      %769 = vmatprep.subr.mxu0 0.0
      %770 = vmatpush1.msra.mxu0 0.0
      %771 = vmatprep.subr.mxu0 0.0
      %772 = vmatpush1.msra.mxu0 0.0
      %773 = vmatprep.subr.mxu0 0.0
      %774 = vmatpush1.msra.mxu0 0.0
      %775 = vmatprep.subr.mxu0 0.0
      %776 = vmatpush1.msra.mxu0 0.0
      %777 = vmatprep.subr.mxu0 0.0
      %778 = vmatpush1.msra.mxu0 0.0
      %779 = vmatprep.subr.mxu0 0.0
      %780 = vmatpush1.msra.mxu0 0.0
      %781 = vmatprep.subr.mxu0 0.0
      %782 = vmatpush1.msra.mxu0 0.0
      %783 = vmatprep.subr.mxu0 0.0
      %784 = vmatpush1.msra.mxu0 0.0
      %785 = vmatprep.subr.mxu0 0.0
      %786 = vmatpush1.msra.mxu0 0.0
      %787 = vmatprep.subr.mxu0 0.0
      %788 = vmatpush1.msra.mxu0 0.0
      %789 = vmatprep.subr.mxu0 0.0
      %790 = vmatpush1.msra.mxu0 0.0
      %791 = vmatprep.subr.mxu0 0.0
      %792 = vmatpush1.msra.mxu0 0.0
      %793 = vmatprep.subr.mxu0 0.0
      %794 = vmatpush1.msra.mxu0 0.0
      %795 = vmatprep.subr.mxu0 0.0
      %796 = vmatpush1.msra.mxu0 0.0
      %797 = vmatprep.subr.mxu0 0.0
      %798 = vmatpush1.msra.mxu0 0.0
      %799 = vmatprep.subr.mxu0 0.0
      %800 = vmatpush1.msra.mxu0 0.0
      %801 = vmatprep.mubr.f32.mxu0 0.0
      %802 = vmatmul.mubr.f32.gmra.mrb[0].mxu0 %v631
      %v803 = vpop.f32.mrb[0].mxu0
      %v804 = vadd.f32 0.0, %v803
      %v805 = vpop.f32.mrb[0].mxu0
      %806 = vmatprep.mubr.f32.mxu0 0.0
      %807 = vmatmul.mubr.f32.gmra.mrb[0].mxu0 %v634
      %v808 = vpop.f32.mrb[0].mxu0
      %v809 = vadd.f32 0.0, %v808
      %v810 = vpop.f32.mrb[0].mxu0
      %811 = vmatprep.mubr.f32.mxu0 0.0
      %812 = vmatmul.mubr.f32.gmra.mrb[0].mxu0 %v637
      %v813 = vpop.f32.mrb[0].mxu0
      %v814 = vadd.f32 0.0, %v813
      %v815 = vpop.f32.mrb[0].mxu0
      %816 = vmatprep.mubr.f32.mxu0 0.0
      %817 = vmatmul.mubr.f32.gmra.mrb[0].mxu0 %v640
      %v818 = vpop.f32.mrb[0].mxu0
      %v819 = vadd.f32 0.0, %v818
      %v820 = vpop.f32.mrb[0].mxu0
      %821 = vdwg.mxu0
      %v822 = vadd.f32 %v509, %v715
      %v823 = vadd.f32 %v511, %v717
      %v824 = vadd.f32 %v598, %v804
      %v825 = vadd.f32 %v515, %v721
      %v826 = vadd.f32 %v517, %v723
      %v827 = vadd.f32 %v603, %v809
      %v828 = vadd.f32 %v521, %v727
      %v829 = vadd.f32 %v523, %v729
      %v830 = vadd.f32 %v608, %v814
      %v831 = vadd.f32 %v527, %v733
      %v832 = vadd.f32 %v529, %v735
      %v833 = vadd.f32 %v613, %v819
      %s834 = scalar_lea.vmem %s1, 96
      %v835 = vld [vmem:[%s834] sm:$0xff]
      %v836 = vld [vmem:[%s834 + $0x8] sm:$0xff]
      %v837 = vld [vmem:[%s834 + $0x10] sm:$0xff]
      %v838 = vld [vmem:[%s834 + $0x18] sm:$0xff]
      %839 = vrot.lane.b32.xlu0 %v207, 110
      %v840 = vpop.permute.xlu0 %839
      %841 = vrot.lane.b32.xlu0 %v220, 110
      %v842 = vpop.permute.xlu0 %841
      %843 = vrot.lane.b32.xlu0 %v208, 110
      %v844 = vpop.permute.xlu0 %843
      %vm845 = vcmask 900096
      %v846 = vsel %vm845, %v840, %v842
      %v847 = vsel %vm845, %v842, %v844
      %v849 = vsel %vm230, %v835, 0
      %v852 = vsel %vm230, %v836, 0
      %v855 = vsel %vm230, %v837, 0
      %v858 = vsel %vm230, %v838, 0
      %v860 = vsel %vm243, %v846, 0
      %v862 = vsel %vm243, %v847, 0
      %v864 = vsel %vm243, %v844, 0
      %866 = vmatprep.subr.mxu0 %v862
      %867 = vmatpush1.msra.mxu0 %v860
      %868 = vmatprep.subr.mxu0 0.0
      %869 = vmatpush1.msra.mxu0 0.0
      %870 = vmatprep.subr.mxu0 0.0
      %871 = vmatpush1.msra.mxu0 0.0
      %872 = vmatprep.subr.mxu0 0.0
      %873 = vmatpush1.msra.mxu0 0.0
      %874 = vmatprep.subr.mxu0 0.0
      %875 = vmatpush1.msra.mxu0 0.0
      %876 = vmatprep.subr.mxu0 0.0
      %877 = vmatpush1.msra.mxu0 0.0
      %878 = vmatprep.subr.mxu0 0.0
      %879 = vmatpush1.msra.mxu0 0.0
      %880 = vmatprep.subr.mxu0 0.0
      %881 = vmatpush1.msra.mxu0 0.0
      %882 = vmatprep.subr.mxu0 0.0
      %883 = vmatpush1.msra.mxu0 0.0
      %884 = vmatprep.subr.mxu0 0.0
      %885 = vmatpush1.msra.mxu0 0.0
      %886 = vmatprep.subr.mxu0 0.0
      %887 = vmatpush1.msra.mxu0 0.0
      %888 = vmatprep.subr.mxu0 0.0
      %889 = vmatpush1.msra.mxu0 0.0
      %890 = vmatprep.subr.mxu0 0.0
      %891 = vmatpush1.msra.mxu0 0.0
      %892 = vmatprep.subr.mxu0 0.0
      %893 = vmatpush1.msra.mxu0 0.0
      %894 = vmatprep.subr.mxu0 0.0
      %895 = vmatpush1.msra.mxu0 0.0
      %896 = vmatprep.subr.mxu0 0.0
      %897 = vmatpush1.msra.mxu0 0.0
      %898 = vmatprep.subr.mxu0 0.0
      %899 = vmatpush1.msra.mxu0 0.0
      %900 = vmatprep.subr.mxu0 0.0
      %901 = vmatpush1.msra.mxu0 0.0
      %902 = vmatprep.subr.mxu0 0.0
      %903 = vmatpush1.msra.mxu0 0.0
      %904 = vmatprep.subr.mxu0 0.0
      %905 = vmatpush1.msra.mxu0 0.0
      %906 = vmatprep.subr.mxu0 0.0
      %907 = vmatpush1.msra.mxu0 0.0
      %908 = vmatprep.subr.mxu0 0.0
      %909 = vmatpush1.msra.mxu0 0.0
      %910 = vmatprep.subr.mxu0 0.0
      %911 = vmatpush1.msra.mxu0 0.0
      %912 = vmatprep.subr.mxu0 0.0
      %913 = vmatpush1.msra.mxu0 0.0
      %914 = vmatprep.subr.mxu0 0.0
      %915 = vmatpush1.msra.mxu0 0.0
      %916 = vmatprep.subr.mxu0 0.0
      %917 = vmatpush1.msra.mxu0 0.0
      %918 = vmatprep.subr.mxu0 0.0
      %919 = vmatpush1.msra.mxu0 0.0
      %920 = vmatprep.subr.mxu0 0.0
      %921 = vmatpush1.msra.mxu0 0.0
      %922 = vmatprep.subr.mxu0 0.0
      %923 = vmatpush1.msra.mxu0 0.0
      %924 = vmatprep.subr.mxu0 0.0
      %925 = vmatpush1.msra.mxu0 0.0
      %926 = vmatprep.subr.mxu0 0.0
      %927 = vmatpush1.msra.mxu0 0.0
      %928 = vmatprep.subr.mxu0 0.0
      %929 = vmatpush1.msra.mxu0 0.0
      %930 = vmatprep.mubr.f32.mxu0 0.0
      %931 = vmatmul.mubr.f32.gmra.mrb[0].mxu0 %v849
      %v932 = vpop.f32.mrb[0].mxu0
      %v933 = vadd.f32 0.0, %v932
      %v934 = vpop.f32.mrb[0].mxu0
      %v935 = vadd.f32 0.0, %v934
      %936 = vmatprep.mubr.f32.mxu0 0.0
      %937 = vmatmul.mubr.f32.gmra.mrb[0].mxu0 %v852
      %v938 = vpop.f32.mrb[0].mxu0
      %v939 = vadd.f32 0.0, %v938
      %v940 = vpop.f32.mrb[0].mxu0
      %v941 = vadd.f32 0.0, %v940
      %942 = vmatprep.mubr.f32.mxu0 0.0
      %943 = vmatmul.mubr.f32.gmra.mrb[0].mxu0 %v855
      %v944 = vpop.f32.mrb[0].mxu0
      %v945 = vadd.f32 0.0, %v944
      %v946 = vpop.f32.mrb[0].mxu0
      %v947 = vadd.f32 0.0, %v946
      %948 = vmatprep.mubr.f32.mxu0 0.0
      %949 = vmatmul.mubr.f32.gmra.mrb[0].mxu0 %v858
      %v950 = vpop.f32.mrb[0].mxu0
      %v951 = vadd.f32 0.0, %v950
      %v952 = vpop.f32.mrb[0].mxu0
      %v953 = vadd.f32 0.0, %v952
      %954 = vdwg.mxu0
      %955 = vmatprep.subr.mxu0 0.0
      %956 = vmatpush1.msra.mxu0 %v864
      %957 = vmatprep.subr.mxu0 0.0
      %958 = vmatpush1.msra.mxu0 0.0
      %959 = vmatprep.subr.mxu0 0.0
      %960 = vmatpush1.msra.mxu0 0.0
      %961 = vmatprep.subr.mxu0 0.0
      %962 = vmatpush1.msra.mxu0 0.0
      %963 = vmatprep.subr.mxu0 0.0
      %964 = vmatpush1.msra.mxu0 0.0
      %965 = vmatprep.subr.mxu0 0.0
      %966 = vmatpush1.msra.mxu0 0.0
      %967 = vmatprep.subr.mxu0 0.0
      %968 = vmatpush1.msra.mxu0 0.0
      %969 = vmatprep.subr.mxu0 0.0
      %970 = vmatpush1.msra.mxu0 0.0
      %971 = vmatprep.subr.mxu0 0.0
      %972 = vmatpush1.msra.mxu0 0.0
      %973 = vmatprep.subr.mxu0 0.0
      %974 = vmatpush1.msra.mxu0 0.0
      %975 = vmatprep.subr.mxu0 0.0
      %976 = vmatpush1.msra.mxu0 0.0
      %977 = vmatprep.subr.mxu0 0.0
      %978 = vmatpush1.msra.mxu0 0.0
      %979 = vmatprep.subr.mxu0 0.0
      %980 = vmatpush1.msra.mxu0 0.0
      %981 = vmatprep.subr.mxu0 0.0
      %982 = vmatpush1.msra.mxu0 0.0
      %983 = vmatprep.subr.mxu0 0.0
      %984 = vmatpush1.msra.mxu0 0.0
      %985 = vmatprep.subr.mxu0 0.0
      %986 = vmatpush1.msra.mxu0 0.0
      %987 = vmatprep.subr.mxu0 0.0
      %988 = vmatpush1.msra.mxu0 0.0
      %989 = vmatprep.subr.mxu0 0.0
      %990 = vmatpush1.msra.mxu0 0.0
      %991 = vmatprep.subr.mxu0 0.0
      %992 = vmatpush1.msra.mxu0 0.0
      %993 = vmatprep.subr.mxu0 0.0
      %994 = vmatpush1.msra.mxu0 0.0
      %995 = vmatprep.subr.mxu0 0.0
      %996 = vmatpush1.msra.mxu0 0.0
      %997 = vmatprep.subr.mxu0 0.0
      %998 = vmatpush1.msra.mxu0 0.0
      %999 = vmatprep.subr.mxu0 0.0
      %1000 = vmatpush1.msra.mxu0 0.0
      %1001 = vmatprep.subr.mxu0 0.0
      %1002 = vmatpush1.msra.mxu0 0.0
      %1003 = vmatprep.subr.mxu0 0.0
      %1004 = vmatpush1.msra.mxu0 0.0
      %1005 = vmatprep.subr.mxu0 0.0
      %1006 = vmatpush1.msra.mxu0 0.0
      %1007 = vmatprep.subr.mxu0 0.0
      %1008 = vmatpush1.msra.mxu0 0.0
      %1009 = vmatprep.subr.mxu0 0.0
      %1010 = vmatpush1.msra.mxu0 0.0
      %1011 = vmatprep.subr.mxu0 0.0
      %1012 = vmatpush1.msra.mxu0 0.0
      %1013 = vmatprep.subr.mxu0 0.0
      %1014 = vmatpush1.msra.mxu0 0.0
      %1015 = vmatprep.subr.mxu0 0.0
      %1016 = vmatpush1.msra.mxu0 0.0
      %1017 = vmatprep.subr.mxu0 0.0
      %1018 = vmatpush1.msra.mxu0 0.0
      %1019 = vmatprep.mubr.f32.mxu0 0.0
      %1020 = vmatmul.mubr.f32.gmra.mrb[0].mxu0 %v849
      %v1021 = vpop.f32.mrb[0].mxu0
      %v1022 = vadd.f32 0.0, %v1021
      %v1023 = vpop.f32.mrb[0].mxu0
      %1024 = vmatprep.mubr.f32.mxu0 0.0
      %1025 = vmatmul.mubr.f32.gmra.mrb[0].mxu0 %v852
      %v1026 = vpop.f32.mrb[0].mxu0
      %v1027 = vadd.f32 0.0, %v1026
      %v1028 = vpop.f32.mrb[0].mxu0
      %1029 = vmatprep.mubr.f32.mxu0 0.0
      %1030 = vmatmul.mubr.f32.gmra.mrb[0].mxu0 %v855
      %v1031 = vpop.f32.mrb[0].mxu0
      %v1032 = vadd.f32 0.0, %v1031
      %v1033 = vpop.f32.mrb[0].mxu0
      %1034 = vmatprep.mubr.f32.mxu0 0.0
      %1035 = vmatmul.mubr.f32.gmra.mrb[0].mxu0 %v858
      %v1036 = vpop.f32.mrb[0].mxu0
      %v1037 = vadd.f32 0.0, %v1036
      %v1038 = vpop.f32.mrb[0].mxu0
      %1039 = vdwg.mxu0
      %v1040 = vadd.f32 %v822, %v933
      %v1041 = vadd.f32 %v823, %v935
      %v1042 = vadd.f32 %v824, %v1022
      %v1043 = vadd.f32 %v825, %v939
      %v1044 = vadd.f32 %v826, %v941
      %v1045 = vadd.f32 %v827, %v1027
      %v1046 = vadd.f32 %v828, %v945
      %v1047 = vadd.f32 %v829, %v947
      %v1048 = vadd.f32 %v830, %v1032
      %v1049 = vadd.f32 %v831, %v951
      %v1050 = vadd.f32 %v832, %v953
      %v1051 = vadd.f32 %v833, %v1037
      %v1052 = vld [vmem:[%s2] sm:$0xff]
      %v1053 = vld [vmem:[%s2 + $0x8] sm:$0xff]
      %v1054 = vld [vmem:[%s2 + $0x10] sm:$0xff]
      %v1055 = vld [vmem:[%s2 + $0x18] sm:$0xff]
      %1057 = vset.pattern.permute.xlu0 0
      %1058 = vperm.xlu0 %1057, %v1052
      %v1059 = vpop.permute.xlu0 %1058
      %1062 = vset.pattern.permute.xlu0 0
      %1063 = vperm.xlu0 %1062, %v1053
      %v1064 = vpop.permute.xlu0 %1063
      %1067 = vset.pattern.permute.xlu0 0
      %1068 = vperm.xlu0 %1067, %v1054
      %v1069 = vpop.permute.xlu0 %1068
      %1072 = vset.pattern.permute.xlu0 0
      %1073 = vperm.xlu0 %1072, %v1055
      %v1074 = vpop.permute.xlu0 %1073
      %v1076 = vadd.f32 %v1040, %v1059
      %v1077 = vadd.f32 %v1041, %v1059
      %v1078 = vadd.f32 %v1042, %v1059
      %v1079 = vadd.f32 %v1043, %v1064
      %v1080 = vadd.f32 %v1044, %v1064
      %v1081 = vadd.f32 %v1045, %v1064
      %v1082 = vadd.f32 %v1046, %v1069
      %v1083 = vadd.f32 %v1047, %v1069
      %v1084 = vadd.f32 %v1048, %v1069
      %v1085 = vadd.f32 %v1049, %v1074
      %v1086 = vadd.f32 %v1050, %v1074
      %v1087 = vadd.f32 %v1051, %v1074
      %vm1088 = vcmp.gt.f32.partialorder %v1076, 0.0
      %vm1089 = vcmp.gt.f32.partialorder %v1077, 0.0
      %vm1090 = vcmp.gt.f32.partialorder %v1078, 0.0
      %vm1091 = vcmp.gt.f32.partialorder %v1079, 0.0
      %vm1092 = vcmp.gt.f32.partialorder %v1080, 0.0
      %vm1093 = vcmp.gt.f32.partialorder %v1081, 0.0
      %vm1094 = vcmp.gt.f32.partialorder %v1082, 0.0
      %vm1095 = vcmp.gt.f32.partialorder %v1083, 0.0
      %vm1096 = vcmp.gt.f32.partialorder %v1084, 0.0
      %vm1097 = vcmp.gt.f32.partialorder %v1085, 0.0
      %vm1098 = vcmp.gt.f32.partialorder %v1086, 0.0
      %vm1099 = vcmp.gt.f32.partialorder %v1087, 0.0
      %v1100 = vmul.f32 %v1076, 0.01
      %v1101 = vmul.f32 %v1077, 0.01
      %v1102 = vmul.f32 %v1078, 0.01
      %v1103 = vmul.f32 %v1079, 0.01
      %v1104 = vmul.f32 %v1080, 0.01
      %v1105 = vmul.f32 %v1081, 0.01
      %v1106 = vmul.f32 %v1082, 0.01
      %v1107 = vmul.f32 %v1083, 0.01
      %v1108 = vmul.f32 %v1084, 0.01
      %v1109 = vmul.f32 %v1085, 0.01
      %v1110 = vmul.f32 %v1086, 0.01
      %v1111 = vmul.f32 %v1087, 0.01
      %v1112 = vsel %vm1088, %v1076, %v1100
      %v1113 = vsel %vm1089, %v1077, %v1101
      %v1114 = vsel %vm1090, %v1078, %v1102
      %v1115 = vsel %vm1091, %v1079, %v1103
      %v1116 = vsel %vm1092, %v1080, %v1104
      %v1117 = vsel %vm1093, %v1081, %v1105
      %v1118 = vsel %vm1094, %v1082, %v1106
      %v1119 = vsel %vm1095, %v1083, %v1107
      %v1120 = vsel %vm1096, %v1084, %v1108
      %v1121 = vsel %vm1097, %v1085, %v1109
      %v1122 = vsel %vm1098, %v1086, %v1110
      %v1123 = vsel %vm1099, %v1087, %v1111
      %1124 = vst [vmem:[%s206] sm:$0xff] %v1112
      %1125 = vst [vmem:[%s206 + $0x8] sm:$0xff] %v1113
      %vm1126 = vcmask 130048
      %1127 = vst.msk [vmem:[%s206 + $0x10] sm:$0xff] %vm1126, %v1114
      %1128 = vst [vmem:[%s206 + $0x18] sm:$0xff] %v1115
      %1129 = vst [vmem:[%s206 + $0x20] sm:$0xff] %v1116
      %1130 = vst.msk [vmem:[%s206 + $0x28] sm:$0xff] %vm1126, %v1117
      %1131 = vst [vmem:[%s206 + $0x30] sm:$0xff] %v1118
      %1132 = vst [vmem:[%s206 + $0x38] sm:$0xff] %v1119
      %1133 = vst.msk [vmem:[%s206 + $0x40] sm:$0xff] %vm1126, %v1120
      %1134 = vst [vmem:[%s206 + $0x48] sm:$0xff] %v1121
      %1135 = vst [vmem:[%s206 + $0x50] sm:$0xff] %v1122
      %1136 = vst.msk [vmem:[%s206 + $0x58] sm:$0xff] %vm1126, %v1123
      %p1137 = scmp.lt.s32.totalorder %s18, 1
      %s1138 = scalar_select %p1137, %s18, 1
      %p1139 = scmp.lt.s32.totalorder %s19, 0
      %s1140 = scalar_select %p1139, %s19, 0
      %s1141 = smul.addr %s1140, 12
      %s1142 = smul.addr %s1138, 12
      %s1143 = sadd.s32 %s1141, %s1142
      %s1144 = smul.addr %s1143, 8
      %s1145 = scalar_lea.vmem %s3, %s1144
      // Predicated region
      $region33: #{upsampling_forward.1} parent=31 // pred_check
        %p1146 = pneg %p116
      $region34: #{upsampling_forward.1} parent=31 // pred_check_branch
        %1148 = sbr.rel (%p1146) target = $region36
      $region35: #{upsampling_forward.1} parent=31 // pred_region
        _
      $region36: #{upsampling_forward.1} parent=31 // pred_fallthru
        _
    $region32: #{upsampling_forward.1} parent=5 // pred_fallthru
      _
    %p1149 = scmp.le.s32.totalorder 2, %s9
    // Predicated region
    $region37: #{upsampling_forward.1} parent=5 // pred_check
      %p1150 = pneg %p1149
    $region38: #{upsampling_forward.1} parent=5 // pred_check_branch
      %1152 = sbr.rel (%p1150) target = $region40
    $region39: #{upsampling_forward.1} parent=5 // pred_region
      %s1153 = ssub.s32 %s9, 2
      // Predicated region
      $region41: #{upsampling_forward.1} parent=39 // pred_check
        %p1154 = pneg %p122
      $region42: #{upsampling_forward.1} parent=39 // pred_check_branch
        %1156 = sbr.rel (%p1154) target = $region44
      $region43: #{upsampling_forward.1} parent=39 // pred_region
        %p1157 = scmp.lt.s32.totalorder %s20, 1
        %s1158 = scalar_select %p1157, %s20, 1
        %p1159 = scmp.lt.s32.totalorder %s21, 0
        %s1160 = scalar_select %p1159, %s21, 0
        %s1161 = smul.addr %s1160, 12
        %s1162 = smul.addr %s1158, 12
        %s1163 = sadd.s32 %s1161, %s1162
        %s1164 = smul.addr %s1163, 8
        %s1165 = scalar_lea.vmem %s3, %s1164
      $region44: #{upsampling_forward.1} parent=39 // pred_fallthru
        _
    $region40: #{upsampling_forward.1} parent=5 // pred_fallthru
      _
  $region6: #{upsampling_forward.1} parent=0 // loop_footer
    %s13 = sadd.s32 1, %s9
  $region7: #{upsampling_forward.1} parent=0 // loop_footer_branch
    %8 = sbr.rel target = $region3
  $region8: #{upsampling_forward.1} parent=0 // loop_exit
    _

</llo_original>
